<compile_context>
chip_gen: v6e
topology: v6e:2x2x1
jax: 0.10.0
libtpu: 0.0.40
codegen_flags: <defaults>
</compile_context>

<pallas_src>
import jax
import jax.numpy as jnp
from jax.experimental import pallas as pl
from jax.experimental.pallas import tpu as pltpu

EPS = 1e-5

# Row offsets of each weight matrix inside the packed weight slab (8-aligned starts).
_W1_ROWS = (0, 28)    # w1: (28, 15)
_W2_ROWS = (32, 47)   # w2: (15, 8)
_W3_ROWS = (48, 56)   # w3: (8, 15)
_W4_ROWS = (56, 71)   # w4: (15, 28)
_W_SLAB_SHAPE = (72, 28)
_V_SLAB_SHAPE = (8, 28)   # rows: g1, be1, g2, be2, g3, be3, b4, (pad)


def _autoencoder_kernel(x_ref, w_ref, v_ref, o_ref):
    x = x_ref[...]                                   # (B, 28)

    # Static slices into the packed parameter slabs.
    w1 = w_ref[_W1_ROWS[0]:_W1_ROWS[1], 0:15]
    w2 = w_ref[_W2_ROWS[0]:_W2_ROWS[1], 0:8]
    w3 = w_ref[_W3_ROWS[0]:_W3_ROWS[1], 0:15]
    w4 = w_ref[_W4_ROWS[0]:_W4_ROWS[1], 0:28]

    g1, be1 = v_ref[0:1, 0:15], v_ref[1:2, 0:15]
    g2, be2 = v_ref[2:3, 0:8],  v_ref[3:4, 0:8]
    g3, be3 = v_ref[4:5, 0:15], v_ref[5:6, 0:15]
    b4 = v_ref[6:7, 0:28]

    inv_b = 1.0 / x.shape[0]

    def bn_relu(h, g, be):
        # One-pass batch stats (training-mode BN, biased variance).
        mu = jnp.sum(h, axis=0, keepdims=True) * inv_b
        ex2 = jnp.sum(h * h, axis=0, keepdims=True) * inv_b
        var = jnp.maximum(ex2 - mu * mu, 0.0)
        # Fold BN affine into a single per-feature scale/shift.
        scale = g * jax.lax.rsqrt(var + EPS)
        shift = be - mu * scale
        return jnp.maximum(h * scale + shift, 0.0)

    # Note: Linear biases b1..b3 are omitted — constants before BN cancel exactly.
    h = bn_relu(jnp.dot(x, w1, preferred_element_type=jnp.float32), g1, be1)  # (B, 15)
    h = bn_relu(jnp.dot(h, w2, preferred_element_type=jnp.float32), g2, be2)  # (B, 8)
    h = bn_relu(jnp.dot(h, w3, preferred_element_type=jnp.float32), g3, be3)  # (B, 15)
    o_ref[...] = jnp.dot(h, w4, preferred_element_type=jnp.float32) + b4      # (B, 28)


def _pack_params(p):
    """Pack all kernel-visible parameters into two f32 slabs (2 DMAs total)."""
    w_slab = jnp.zeros(_W_SLAB_SHAPE, jnp.float32)
    w_slab = w_slab.at[_W1_ROWS[0]:_W1_ROWS[1], 0:15].set(p["w1"])
    w_slab = w_slab.at[_W2_ROWS[0]:_W2_ROWS[1], 0:8].set(p["w2"])
    w_slab = w_slab.at[_W3_ROWS[0]:_W3_ROWS[1], 0:15].set(p["w3"])
    w_slab = w_slab.at[_W4_ROWS[0]:_W4_ROWS[1], 0:28].set(p["w4"])

    v_slab = jnp.zeros(_V_SLAB_SHAPE, jnp.float32)
    v_slab = v_slab.at[0, 0:15].set(p["g1"])
    v_slab = v_slab.at[1, 0:15].set(p["be1"])
    v_slab = v_slab.at[2, 0:8].set(p["g2"])
    v_slab = v_slab.at[3, 0:8].set(p["be2"])
    v_slab = v_slab.at[4, 0:15].set(p["g3"])
    v_slab = v_slab.at[5, 0:15].set(p["be3"])
    v_slab = v_slab.at[6, 0:28].set(p["b4"])
    return w_slab, v_slab


def autoencoder_forward(x, params):
    """x: (B, 28) float32. params: dict of weights (see init_params)."""
    B = x.shape[0]
    w_slab, v_slab = _pack_params(params)

    vmem = pl.BlockSpec(memory_space=pltpu.MemorySpace.VMEM)
    return pl.pallas_call(
        _autoencoder_kernel,
        out_shape=jax.ShapeDtypeStruct((B, 28), jnp.float32),
        in_specs=[vmem, vmem, vmem],
        out_specs=vmem,
    )(x, w_slab, v_slab)


def init_params(key):
    """Deterministic parameter init mirroring weights_init_normal:
       Linear: weight ~ N(0,1), bias = 0; BatchNorm1d: gamma ~ N(0,1), beta = 0."""
    ks = jax.random.split(key, 8)

    def lin(k, fan_in, fan_out):
        # PyTorch Linear.weight is (out, in); we store the transpose (in, out).
        w = jax.random.normal(k, (fan_out, fan_in), dtype=jnp.float32).T
        b = jnp.zeros((fan_out,), dtype=jnp.float32)
        return w, b

    def bn(k, n):
        g = jax.random.normal(k, (n,), dtype=jnp.float32)
        be = jnp.zeros((n,), dtype=jnp.float32)
        return g, be

    w1, b1 = lin(ks[0], 28, 15)
    g1, be1 = bn(ks[1], 15)
    w2, b2 = lin(ks[2], 15, 8)
    g2, be2 = bn(ks[3], 8)
    w3, b3 = lin(ks[4], 8, 15)
    g3, be3 = bn(ks[5], 15)
    w4, b4 = lin(ks[6], 15, 28)

    return dict(
        w1=w1, b1=b1, g1=g1, be1=be1,
        w2=w2, b2=b2, g2=g2, be2=be2,
        w3=w3, b3=b3, g3=g3, be3=be3,
        w4=w4, b4=b4,
    )


def _reference_forward(x, p):
    """Pure-JAX reference (includes the Linear biases; BN cancels b1..b3 exactly)."""
    def bn_relu(h, g, be):
        mu = jnp.mean(h, axis=0, keepdims=True)
        var = jnp.mean((h - mu) ** 2, axis=0, keepdims=True)
        return jnp.maximum((h - mu) / jnp.sqrt(var + EPS) * g + be, 0.0)

    h = bn_relu(x @ p["w1"] + p["b1"], p["g1"], p["be1"])
    h = bn_relu(h @ p["w2"] + p["b2"], p["g2"], p["be2"])
    h = bn_relu(h @ p["w3"] + p["b3"], p["g3"], p["be3"])
    return h @ p["w4"] + p["b4"]


if __name__ == "__main__":
    key = jax.random.PRNGKey(0)
    k_param, k_x = jax.random.split(key)

    B = 8  # small batch; BatchNorm1d needs B > 1
    x = jax.random.normal(k_x, (B, 28), dtype=jnp.float32)
    params = init_params(k_param)

    out = autoencoder_forward(x, params)
    out = jax.block_until_ready(out)

    ref = _reference_forward(x, params)
    assert out.shape == (B, 28)
    assert jnp.allclose(out, ref, atol=1e-3, rtol=1e-4)

    print("KERNEL_OK")
</pallas_src>

<mosaic_0001>
module attributes {stable_mosaic.version = 11 : i64} {
  func.func @_autoencoder_kernel(%arg0: memref<8x28xf32, #tpu.memory_space<vmem>>, %arg1: memref<72x28xf32, #tpu.memory_space<vmem>>, %arg2: memref<8x28xf32, #tpu.memory_space<vmem>>, %arg3: memref<8x28xf32, #tpu.memory_space<vmem>>) attributes {dimension_semantics = [], scalar_prefetch = 0 : i64, scratch_operands = 0 : i64, tpu.core_type = #tpu.core_type<tc>} {
    %c0 = arith.constant 0 : index
    %c0_0 = arith.constant 0 : index
    %0 = vector.load %arg0[%c0, %c0_0] : memref<8x28xf32, #tpu.memory_space<vmem>>, vector<8x28xf32>
    %c0_1 = arith.constant 0 : index
    %c0_2 = arith.constant 0 : index
    %1 = vector.load %arg1[%c0_1, %c0_2] : memref<72x28xf32, #tpu.memory_space<vmem>>, vector<28x15xf32>
    %c32 = arith.constant 32 : index
    %c0_3 = arith.constant 0 : index
    %2 = vector.load %arg1[%c32, %c0_3] : memref<72x28xf32, #tpu.memory_space<vmem>>, vector<15x8xf32>
    %c48 = arith.constant 48 : index
    %c0_4 = arith.constant 0 : index
    %3 = vector.load %arg1[%c48, %c0_4] : memref<72x28xf32, #tpu.memory_space<vmem>>, vector<8x15xf32>
    %c56 = arith.constant 56 : index
    %c0_5 = arith.constant 0 : index
    %4 = vector.load %arg1[%c56, %c0_5] : memref<72x28xf32, #tpu.memory_space<vmem>>, vector<15x28xf32>
    %c0_6 = arith.constant 0 : index
    %c0_7 = arith.constant 0 : index
    %5 = vector.load %arg2[%c0_6, %c0_7] : memref<8x28xf32, #tpu.memory_space<vmem>>, vector<1x15xf32>
    %c1 = arith.constant 1 : index
    %c0_8 = arith.constant 0 : index
    %6 = vector.load %arg2[%c1, %c0_8] : memref<8x28xf32, #tpu.memory_space<vmem>>, vector<1x15xf32>
    %c2 = arith.constant 2 : index
    %c0_9 = arith.constant 0 : index
    %7 = vector.load %arg2[%c2, %c0_9] : memref<8x28xf32, #tpu.memory_space<vmem>>, vector<1x8xf32>
    %c3 = arith.constant 3 : index
    %c0_10 = arith.constant 0 : index
    %8 = vector.load %arg2[%c3, %c0_10] : memref<8x28xf32, #tpu.memory_space<vmem>>, vector<1x8xf32>
    %c4 = arith.constant 4 : index
    %c0_11 = arith.constant 0 : index
    %9 = vector.load %arg2[%c4, %c0_11] : memref<8x28xf32, #tpu.memory_space<vmem>>, vector<1x15xf32>
    %c5 = arith.constant 5 : index
    %c0_12 = arith.constant 0 : index
    %10 = vector.load %arg2[%c5, %c0_12] : memref<8x28xf32, #tpu.memory_space<vmem>>, vector<1x15xf32>
    %c6 = arith.constant 6 : index
    %c0_13 = arith.constant 0 : index
    %11 = vector.load %arg2[%c6, %c0_13] : memref<8x28xf32, #tpu.memory_space<vmem>>, vector<1x28xf32>
    %cst = arith.constant dense<0.000000e+00> : vector<8x15xf32>
    %12 = tpu.matmul %0, %1, %cst {dimension_numbers = #tpu.dot_dimension_numbers<[1], [0], [0], [1], [0, 0, 1, 1], [], []>} : vector<8x28xf32>, vector<28x15xf32>, vector<8x15xf32> -> vector<8x15xf32>
    %cst_14 = arith.constant dense<0.000000e+00> : vector<15xf32>
    %13 = vector.multi_reduction <add>, %12, %cst_14 [0] : vector<8x15xf32> to vector<15xf32>
    %14 = vector.shape_cast %13 : vector<15xf32> to vector<1x15xf32>
    %cst_15 = arith.constant 1.250000e-01 : f32
    %15 = vector.broadcast %cst_15 : f32 to vector<1x15xf32>
    %16 = arith.mulf %14, %15 : vector<1x15xf32>
    %17 = arith.mulf %12, %12 : vector<8x15xf32>
    %cst_16 = arith.constant dense<0.000000e+00> : vector<15xf32>
    %18 = vector.multi_reduction <add>, %17, %cst_16 [0] : vector<8x15xf32> to vector<15xf32>
    %19 = vector.shape_cast %18 : vector<15xf32> to vector<1x15xf32>
    %cst_17 = arith.constant 1.250000e-01 : f32
    %20 = vector.broadcast %cst_17 : f32 to vector<1x15xf32>
    %21 = arith.mulf %19, %20 : vector<1x15xf32>
    %22 = arith.mulf %16, %16 : vector<1x15xf32>
    %23 = arith.subf %21, %22 : vector<1x15xf32>
    %cst_18 = arith.constant 0.000000e+00 : f32
    %24 = vector.broadcast %cst_18 : f32 to vector<1x15xf32>
    %25 = arith.maximumf %23, %24 : vector<1x15xf32>
    %cst_19 = arith.constant 9.99999974E-6 : f32
    %26 = vector.broadcast %cst_19 : f32 to vector<1x15xf32>
    %27 = arith.addf %25, %26 : vector<1x15xf32>
    %28 = math.rsqrt %27 : vector<1x15xf32>
    %29 = arith.mulf %5, %28 : vector<1x15xf32>
    %30 = arith.mulf %16, %29 : vector<1x15xf32>
    %31 = arith.subf %6, %30 : vector<1x15xf32>
    %32 = vector.broadcast %29 : vector<1x15xf32> to vector<8x15xf32>
    %33 = arith.mulf %12, %32 : vector<8x15xf32>
    %34 = vector.broadcast %31 : vector<1x15xf32> to vector<8x15xf32>
    %35 = arith.addf %33, %34 : vector<8x15xf32>
    %cst_20 = arith.constant 0.000000e+00 : f32
    %36 = vector.broadcast %cst_20 : f32 to vector<8x15xf32>
    %37 = arith.maximumf %35, %36 : vector<8x15xf32>
    %cst_21 = arith.constant dense<0.000000e+00> : vector<8x8xf32>
    %38 = tpu.matmul %37, %2, %cst_21 {dimension_numbers = #tpu.dot_dimension_numbers<[1], [0], [0], [1], [0, 0, 1, 1], [], []>} : vector<8x15xf32>, vector<15x8xf32>, vector<8x8xf32> -> vector<8x8xf32>
    %cst_22 = arith.constant dense<0.000000e+00> : vector<8xf32>
    %39 = vector.multi_reduction <add>, %38, %cst_22 [0] : vector<8x8xf32> to vector<8xf32>
    %40 = vector.shape_cast %39 : vector<8xf32> to vector<1x8xf32>
    %cst_23 = arith.constant 1.250000e-01 : f32
    %41 = vector.broadcast %cst_23 : f32 to vector<1x8xf32>
    %42 = arith.mulf %40, %41 : vector<1x8xf32>
    %43 = arith.mulf %38, %38 : vector<8x8xf32>
    %cst_24 = arith.constant dense<0.000000e+00> : vector<8xf32>
    %44 = vector.multi_reduction <add>, %43, %cst_24 [0] : vector<8x8xf32> to vector<8xf32>
    %45 = vector.shape_cast %44 : vector<8xf32> to vector<1x8xf32>
    %cst_25 = arith.constant 1.250000e-01 : f32
    %46 = vector.broadcast %cst_25 : f32 to vector<1x8xf32>
    %47 = arith.mulf %45, %46 : vector<1x8xf32>
    %48 = arith.mulf %42, %42 : vector<1x8xf32>
    %49 = arith.subf %47, %48 : vector<1x8xf32>
    %cst_26 = arith.constant 0.000000e+00 : f32
    %50 = vector.broadcast %cst_26 : f32 to vector<1x8xf32>
    %51 = arith.maximumf %49, %50 : vector<1x8xf32>
    %cst_27 = arith.constant 9.99999974E-6 : f32
    %52 = vector.broadcast %cst_27 : f32 to vector<1x8xf32>
    %53 = arith.addf %51, %52 : vector<1x8xf32>
    %54 = math.rsqrt %53 : vector<1x8xf32>
    %55 = arith.mulf %7, %54 : vector<1x8xf32>
    %56 = arith.mulf %42, %55 : vector<1x8xf32>
    %57 = arith.subf %8, %56 : vector<1x8xf32>
    %58 = vector.broadcast %55 : vector<1x8xf32> to vector<8x8xf32>
    %59 = arith.mulf %38, %58 : vector<8x8xf32>
    %60 = vector.broadcast %57 : vector<1x8xf32> to vector<8x8xf32>
    %61 = arith.addf %59, %60 : vector<8x8xf32>
    %cst_28 = arith.constant 0.000000e+00 : f32
    %62 = vector.broadcast %cst_28 : f32 to vector<8x8xf32>
    %63 = arith.maximumf %61, %62 : vector<8x8xf32>
    %cst_29 = arith.constant dense<0.000000e+00> : vector<8x15xf32>
    %64 = tpu.matmul %63, %3, %cst_29 {dimension_numbers = #tpu.dot_dimension_numbers<[1], [0], [0], [1], [0, 0, 1, 1], [], []>} : vector<8x8xf32>, vector<8x15xf32>, vector<8x15xf32> -> vector<8x15xf32>
    %cst_30 = arith.constant dense<0.000000e+00> : vector<15xf32>
    %65 = vector.multi_reduction <add>, %64, %cst_30 [0] : vector<8x15xf32> to vector<15xf32>
    %66 = vector.shape_cast %65 : vector<15xf32> to vector<1x15xf32>
    %cst_31 = arith.constant 1.250000e-01 : f32
    %67 = vector.broadcast %cst_31 : f32 to vector<1x15xf32>
    %68 = arith.mulf %66, %67 : vector<1x15xf32>
    %69 = arith.mulf %64, %64 : vector<8x15xf32>
    %cst_32 = arith.constant dense<0.000000e+00> : vector<15xf32>
    %70 = vector.multi_reduction <add>, %69, %cst_32 [0] : vector<8x15xf32> to vector<15xf32>
    %71 = vector.shape_cast %70 : vector<15xf32> to vector<1x15xf32>
    %cst_33 = arith.constant 1.250000e-01 : f32
    %72 = vector.broadcast %cst_33 : f32 to vector<1x15xf32>
    %73 = arith.mulf %71, %72 : vector<1x15xf32>
    %74 = arith.mulf %68, %68 : vector<1x15xf32>
    %75 = arith.subf %73, %74 : vector<1x15xf32>
    %cst_34 = arith.constant 0.000000e+00 : f32
    %76 = vector.broadcast %cst_34 : f32 to vector<1x15xf32>
    %77 = arith.maximumf %75, %76 : vector<1x15xf32>
    %cst_35 = arith.constant 9.99999974E-6 : f32
    %78 = vector.broadcast %cst_35 : f32 to vector<1x15xf32>
    %79 = arith.addf %77, %78 : vector<1x15xf32>
    %80 = math.rsqrt %79 : vector<1x15xf32>
    %81 = arith.mulf %9, %80 : vector<1x15xf32>
    %82 = arith.mulf %68, %81 : vector<1x15xf32>
    %83 = arith.subf %10, %82 : vector<1x15xf32>
    %84 = vector.broadcast %81 : vector<1x15xf32> to vector<8x15xf32>
    %85 = arith.mulf %64, %84 : vector<8x15xf32>
    %86 = vector.broadcast %83 : vector<1x15xf32> to vector<8x15xf32>
    %87 = arith.addf %85, %86 : vector<8x15xf32>
    %cst_36 = arith.constant 0.000000e+00 : f32
    %88 = vector.broadcast %cst_36 : f32 to vector<8x15xf32>
    %89 = arith.maximumf %87, %88 : vector<8x15xf32>
    %cst_37 = arith.constant dense<0.000000e+00> : vector<8x28xf32>
    %90 = tpu.matmul %89, %4, %cst_37 {dimension_numbers = #tpu.dot_dimension_numbers<[1], [0], [0], [1], [0, 0, 1, 1], [], []>} : vector<8x15xf32>, vector<15x28xf32>, vector<8x28xf32> -> vector<8x28xf32>
    %91 = vector.broadcast %11 : vector<1x28xf32> to vector<8x28xf32>
    %92 = arith.addf %90, %91 : vector<8x28xf32>
    %c0_38 = arith.constant 0 : index
    %c0_39 = arith.constant 0 : index
    %93 = vector.load %arg3[%c0_38, %c0_39] : memref<8x28xf32, #tpu.memory_space<vmem>>, vector<8x28xf32>
    tpu.vector_store %arg3[%c0_38, %c0_39], %92 {strides = array<i32>} : memref<8x28xf32, #tpu.memory_space<vmem>>, vector<8x28xf32>,
    return
  }
}

</mosaic_0001>

<llo_original>
// kernel: tpu_custom_call.1
$region0: #{tpu_custom_call.1}
  #allocation0 [shape = 'u32[]', space=smem, size = 0x4, offset = 0x4, fixed_abs, tag = 'smem constant byte address 0x4 - core index']
  #allocation1 [shape = 'u32[144,128]{1,0:T(1,128)}', space=vmem, size = 0x12000, scoped, tag = 'internal scratch']
  %s0 = inlined_call_operand.vmem [shape: f32[8,28], index: 0, kind: input, shape index: {}]
  %s1 = inlined_call_operand.vmem [shape: f32[72,28], index: 1, kind: input, shape index: {}]
  %s2 = inlined_call_operand.vmem [shape: f32[8,28], index: 2, kind: input, shape index: {}]
  %s3 = inlined_call_operand.hbm [shape: f32[8,28], index: 3, kind: output, shape index: {}]
  %s4 = sld [smem:[#allocation0]]
  $region22: #{tpu_custom_call.1} parent=0
    _
  %s6 = ssub.s32 1, %s4
  %s7 = scalar_select 0, %s6, %s4
  $region1: #{tpu_custom_call.1} parent=0
    #allocation2 [shape = 'u8[4096]{0}', space=vmem, size = 0x1000, scoped, tag = 'output window, operand 0, single buffered']
    #allocation3 [shape = 's32[1]{0}', space=sflag, size = 0x4, scoped, tag = 'scoped memory for tpu_custom_call.1']
    %8 = vsyncpa [#allocation3], 0
    // Predicated region
    $region2: #{tpu_custom_call.1} parent=1 // pred_check
      _
    $region3: #{tpu_custom_call.1} parent=1 // pred_check_branch
      %10 = sbr.rel (0) target = $region5
    $region4: #{tpu_custom_call.1} parent=1 // pred_region
      _
    $region5: #{tpu_custom_call.1} parent=1 // pred_fallthru
      _
    // Predicated region
    $region6: #{tpu_custom_call.1} parent=1 // pred_check
      _
    $region7: #{tpu_custom_call.1} parent=1 // pred_check_branch
      %12 = sbr.rel (0) target = $region9
    $region8: #{tpu_custom_call.1} parent=1 // pred_region
      _
    $region9: #{tpu_custom_call.1} parent=1 // pred_fallthru
      _
    // Predicated region
    $region10: #{tpu_custom_call.1} parent=1 // pred_check
      _
    $region11: #{tpu_custom_call.1} parent=1 // pred_check_branch
      %14 = sbr.rel (0) target = $region13
    $region12: #{tpu_custom_call.1} parent=1 // pred_region
      _
    $region13: #{tpu_custom_call.1} parent=1 // pred_fallthru
      _
    %v15 = vld [vmem:[%s0] sm:$0xff]
    %v16 = vld [vmem:[%s1] sm:$0xff]
    %v17 = vld [vmem:[%s1 + $0x8] sm:$0xff]
    %v18 = vld [vmem:[%s1 + $0x10] sm:$0xff]
    %v19 = vld [vmem:[%s1 + $0x18] sm:$0xf]
    %v20 = vld [vmem:[%s1 + $0x20] sm:$0xff]
    %v21 = vld [vmem:[%s1 + $0x28] sm:$0x7f]
    %v22 = vld [vmem:[%s1 + $0x30] sm:$0xff]
    %v23 = vld [vmem:[%s1 + $0x38] sm:$0xff]
    %v24 = vld [vmem:[%s1 + $0x40] sm:$0x7f]
    %v25 = vld [vmem:[%s2] sm:$0x1]
    %v26 = vld [vmem:[%s2 + $0x1] sm:$0x1]
    %v27 = vld [vmem:[%s2 + $0x2] sm:$0x1]
    %v28 = vld [vmem:[%s2 + $0x3] sm:$0x1]
    %v29 = vld [vmem:[%s2 + $0x4] sm:$0x1]
    %v30 = vld [vmem:[%s2 + $0x5] sm:$0x1]
    %v31 = vld [vmem:[%s2 + $0x6] sm:$0x1]
    %vm32 = vcmask 228352
    %v34 = vsel %vm32, %v15, 0
    %vm36 = vcmask 1043456
    %v38 = vsel %vm36, %v19, 0
    %40 = vmatprep.subr.mxu0 0.0
    %41 = vmatpush1.msra.mxu0 0.0
    %42 = vmatprep.subr.mxu0 0.0
    %43 = vmatpush1.msra.mxu0 0.0
    %44 = vmatprep.subr.mxu0 0.0
    %45 = vmatpush1.msra.mxu0 0.0
    %46 = vmatprep.subr.mxu0 0.0
    %47 = vmatpush1.msra.mxu0 0.0
    %48 = vmatprep.subr.mxu0 0.0
    %49 = vmatpush1.msra.mxu0 0.0
    %50 = vmatprep.subr.mxu0 0.0
    %51 = vmatpush1.msra.mxu0 0.0
    %52 = vmatprep.subr.mxu0 0.0
    %53 = vmatpush1.msra.mxu0 0.0
    %54 = vmatprep.subr.mxu0 0.0
    %55 = vmatpush1.msra.mxu0 0.0
    %56 = vmatprep.subr.mxu0 0.0
    %57 = vmatpush1.msra.mxu0 0.0
    %58 = vmatprep.subr.mxu0 0.0
    %59 = vmatpush1.msra.mxu0 0.0
    %60 = vmatprep.subr.mxu0 0.0
    %61 = vmatpush1.msra.mxu0 0.0
    %62 = vmatprep.subr.mxu0 0.0
    %63 = vmatpush1.msra.mxu0 0.0
    %64 = vmatprep.subr.mxu0 0.0
    %65 = vmatpush1.msra.mxu0 %v38
    %66 = vmatprep.subr.mxu0 0.0
    %67 = vmatpush1.msra.mxu0 %v18
    %68 = vmatprep.subr.mxu0 0.0
    %69 = vmatpush1.msra.mxu0 %v17
    %70 = vmatprep.subr.mxu0 0.0
    %71 = vmatpush1.msra.mxu0 %v16
    %72 = vmatprep.subr.mxu0 0.0
    %73 = vmatpush2.msra.mxu0 0.0
    %74 = vmatprep.subr.mxu0 0.0
    %75 = vmatpush2.msra.mxu0 0.0
    %76 = vmatprep.subr.mxu0 0.0
    %77 = vmatpush2.msra.mxu0 0.0
    %78 = vmatprep.subr.mxu0 0.0
    %79 = vmatpush2.msra.mxu0 0.0
    %80 = vmatprep.subr.mxu0 0.0
    %81 = vmatpush2.msra.mxu0 0.0
    %82 = vmatprep.subr.mxu0 0.0
    %83 = vmatpush2.msra.mxu0 0.0
    %84 = vmatprep.subr.mxu0 0.0
    %85 = vmatpush2.msra.mxu0 0.0
    %86 = vmatprep.subr.mxu0 0.0
    %87 = vmatpush2.msra.mxu0 0.0
    %88 = vmatprep.subr.mxu0 0.0
    %89 = vmatpush2.msra.mxu0 0.0
    %90 = vmatprep.subr.mxu0 0.0
    %91 = vmatpush2.msra.mxu0 0.0
    %92 = vmatprep.subr.mxu0 0.0
    %93 = vmatpush2.msra.mxu0 0.0
    %94 = vmatprep.subr.mxu0 0.0
    %95 = vmatpush2.msra.mxu0 0.0
    %96 = vmatprep.subr.mxu0 0.0
    %97 = vmatpush2.msra.mxu0 0.0
    %98 = vmatprep.subr.mxu0 0.0
    %99 = vmatpush2.msra.mxu0 0.0
    %100 = vmatprep.subr.mxu0 0.0
    %101 = vmatpush2.msra.mxu0 0.0
    %102 = vmatprep.subr.mxu0 0.0
    %103 = vmatpush2.msra.mxu0 0.0
    %104 = vmatprep.mubr.f32.mxu0 0.0
    %105 = vmatmul.mubr.f32.gmra.mxu0 %v34
    %v106 = vpop.f32.mrf.mxu0
    %v107 = vadd.f32 0.0, %v106
    %v108 = vpop.f32.mrf.mxu0
    %109 = vdwg.mxu0
    %vm110 = vcmask 121856
    %v111 = vsel %vm110, %v107, 0.0
    %v112 = vrot.slane %v111, 4
    %v113 = vadd.f32 %v111, %v112
    %v114 = vrot.slane %v113, 2
    %v115 = vadd.f32 %v113, %v114
    %v116 = vrot.slane %v115, 1
    %v117 = vadd.f32 %v115, %v116
    %v118 = vmul.f32 %v117, 0.125
    %v119 = vmul.f32 %v107, %v107
    %v120 = vsel %vm110, %v119, 0.0
    %v121 = vrot.slane %v120, 4
    %v122 = vadd.f32 %v120, %v121
    %v123 = vrot.slane %v122, 2
    %v124 = vadd.f32 %v122, %v123
    %v125 = vrot.slane %v124, 1
    %v126 = vadd.f32 %v124, %v125
    %v127 = vmul.f32 %v126, 0.125
    %v128 = vmul.f32 %v118, %v118
    %v129 = vsub.f32 %v127, %v128
    %v130 = vmax.f32 %v129, 0.0
    %v131 = vadd.f32 %v130, 1e-05
    %v132 = vrsqrt.pop %v131
    %v133 = vmul.f32 %v25, %v132
    %v134 = vmul.f32 %v118, %v133
    %v135 = vsub.f32 %v26, %v134
    %v136 = vlaneseq
    %v137 = vshrl.u32 %v136, 7
    %v138 = vsub.s32 0, %v137
    %v139 = vrot.slane %v133, %v138
    %v140 = vmul.f32 %v107, %v139
    %v141 = vlaneseq
    %v142 = vshrl.u32 %v141, 7
    %v143 = vsub.s32 0, %v142
    %v144 = vrot.slane %v135, %v143
    %v145 = vadd.f32 %v140, %v144
    %v146 = vmax.f32 %v145, 0.0
    %v148 = vsel %vm110, %v146, 0
    %vm150 = vcmask 1046528
    %v152 = vsel %vm150, %v21, 0
    %154 = vmatprep.subr.mxu0 0.0
    %155 = vmatpush1.msra.mxu0 0.0
    %156 = vmatprep.subr.mxu0 0.0
    %157 = vmatpush1.msra.mxu0 0.0
    %158 = vmatprep.subr.mxu0 0.0
    %159 = vmatpush1.msra.mxu0 0.0
    %160 = vmatprep.subr.mxu0 0.0
    %161 = vmatpush1.msra.mxu0 0.0
    %162 = vmatprep.subr.mxu0 0.0
    %163 = vmatpush1.msra.mxu0 0.0
    %164 = vmatprep.subr.mxu0 0.0
    %165 = vmatpush1.msra.mxu0 0.0
    %166 = vmatprep.subr.mxu0 0.0
    %167 = vmatpush1.msra.mxu0 0.0
    %168 = vmatprep.subr.mxu0 0.0
    %169 = vmatpush1.msra.mxu0 0.0
    %170 = vmatprep.subr.mxu0 0.0
    %171 = vmatpush1.msra.mxu0 0.0
    %172 = vmatprep.subr.mxu0 0.0
    %173 = vmatpush1.msra.mxu0 0.0
    %174 = vmatprep.subr.mxu0 0.0
    %175 = vmatpush1.msra.mxu0 0.0
    %176 = vmatprep.subr.mxu0 0.0
    %177 = vmatpush1.msra.mxu0 0.0
    %178 = vmatprep.subr.mxu0 0.0
    %179 = vmatpush1.msra.mxu0 0.0
    %180 = vmatprep.subr.mxu0 0.0
    %181 = vmatpush1.msra.mxu0 0.0
    %182 = vmatprep.subr.mxu0 0.0
    %183 = vmatpush1.msra.mxu0 %v152
    %184 = vmatprep.subr.mxu0 0.0
    %185 = vmatpush1.msra.mxu0 %v20
    %186 = vmatprep.subr.mxu0 0.0
    %187 = vmatpush2.msra.mxu0 0.0
    %188 = vmatprep.subr.mxu0 0.0
    %189 = vmatpush2.msra.mxu0 0.0
    %190 = vmatprep.subr.mxu0 0.0
    %191 = vmatpush2.msra.mxu0 0.0
    %192 = vmatprep.subr.mxu0 0.0
    %193 = vmatpush2.msra.mxu0 0.0
    %194 = vmatprep.subr.mxu0 0.0
    %195 = vmatpush2.msra.mxu0 0.0
    %196 = vmatprep.subr.mxu0 0.0
    %197 = vmatpush2.msra.mxu0 0.0
    %198 = vmatprep.subr.mxu0 0.0
    %199 = vmatpush2.msra.mxu0 0.0
    %200 = vmatprep.subr.mxu0 0.0
    %201 = vmatpush2.msra.mxu0 0.0
    %202 = vmatprep.subr.mxu0 0.0
    %203 = vmatpush2.msra.mxu0 0.0
    %204 = vmatprep.subr.mxu0 0.0
    %205 = vmatpush2.msra.mxu0 0.0
    %206 = vmatprep.subr.mxu0 0.0
    %207 = vmatpush2.msra.mxu0 0.0
    %208 = vmatprep.subr.mxu0 0.0
    %209 = vmatpush2.msra.mxu0 0.0
    %210 = vmatprep.subr.mxu0 0.0
    %211 = vmatpush2.msra.mxu0 0.0
    %212 = vmatprep.subr.mxu0 0.0
    %213 = vmatpush2.msra.mxu0 0.0
    %214 = vmatprep.subr.mxu0 0.0
    %215 = vmatpush2.msra.mxu0 0.0
    %216 = vmatprep.subr.mxu0 0.0
    %217 = vmatpush2.msra.mxu0 0.0
    %218 = vmatprep.mubr.f32.mxu0 0.0
    %219 = vmatmul.mubr.f32.gmra.mxu0 %v148
    %v220 = vpop.f32.mrf.mxu0
    %v221 = vadd.f32 0.0, %v220
    %v222 = vpop.f32.mrf.mxu0
    %223 = vdwg.mxu0
    %vm224 = vcmask 64512
    %v225 = vsel %vm224, %v221, 0.0
    %v226 = vrot.slane %v225, 4
    %v227 = vadd.f32 %v225, %v226
    %v228 = vrot.slane %v227, 2
    %v229 = vadd.f32 %v227, %v228
    %v230 = vrot.slane %v229, 1
    %v231 = vadd.f32 %v229, %v230
    %v232 = vmul.f32 %v231, 0.125
    %v233 = vmul.f32 %v221, %v221
    %v234 = vsel %vm224, %v233, 0.0
    %v235 = vrot.slane %v234, 4
    %v236 = vadd.f32 %v234, %v235
    %v237 = vrot.slane %v236, 2
    %v238 = vadd.f32 %v236, %v237
    %v239 = vrot.slane %v238, 1
    %v240 = vadd.f32 %v238, %v239
    %v241 = vmul.f32 %v240, 0.125
    %v242 = vmul.f32 %v232, %v232
    %v243 = vsub.f32 %v241, %v242
    %v244 = vmax.f32 %v243, 0.0
    %v245 = vadd.f32 %v244, 1e-05
    %v246 = vrsqrt.pop %v245
    %v247 = vmul.f32 %v27, %v246
    %v248 = vmul.f32 %v232, %v247
    %v249 = vsub.f32 %v28, %v248
    %v250 = vlaneseq
    %v251 = vshrl.u32 %v250, 7
    %v252 = vsub.s32 0, %v251
    %v253 = vrot.slane %v247, %v252
    %v254 = vmul.f32 %v221, %v253
    %v255 = vlaneseq
    %v256 = vshrl.u32 %v255, 7
    %v257 = vsub.s32 0, %v256
    %v258 = vrot.slane %v249, %v257
    %v259 = vadd.f32 %v254, %v258
    %v260 = vmax.f32 %v259, 0.0
    %v262 = vsel %vm224, %v260, 0
    %264 = vmatprep.subr.mxu0 0.0
    %265 = vmatpush1.msra.mxu0 0.0
    %266 = vmatprep.subr.mxu0 0.0
    %267 = vmatpush1.msra.mxu0 0.0
    %268 = vmatprep.subr.mxu0 0.0
    %269 = vmatpush1.msra.mxu0 0.0
    %270 = vmatprep.subr.mxu0 0.0
    %271 = vmatpush1.msra.mxu0 0.0
    %272 = vmatprep.subr.mxu0 0.0
    %273 = vmatpush1.msra.mxu0 0.0
    %274 = vmatprep.subr.mxu0 0.0
    %275 = vmatpush1.msra.mxu0 0.0
    %276 = vmatprep.subr.mxu0 0.0
    %277 = vmatpush1.msra.mxu0 0.0
    %278 = vmatprep.subr.mxu0 0.0
    %279 = vmatpush1.msra.mxu0 0.0
    %280 = vmatprep.subr.mxu0 0.0
    %281 = vmatpush1.msra.mxu0 0.0
    %282 = vmatprep.subr.mxu0 0.0
    %283 = vmatpush1.msra.mxu0 0.0
    %284 = vmatprep.subr.mxu0 0.0
    %285 = vmatpush1.msra.mxu0 0.0
    %286 = vmatprep.subr.mxu0 0.0
    %287 = vmatpush1.msra.mxu0 0.0
    %288 = vmatprep.subr.mxu0 0.0
    %289 = vmatpush1.msra.mxu0 0.0
    %290 = vmatprep.subr.mxu0 0.0
    %291 = vmatpush1.msra.mxu0 0.0
    %292 = vmatprep.subr.mxu0 0.0
    %293 = vmatpush1.msra.mxu0 0.0
    %294 = vmatprep.subr.mxu0 0.0
    %295 = vmatpush1.msra.mxu0 %v22
    %296 = vmatprep.subr.mxu0 0.0
    %297 = vmatpush2.msra.mxu0 0.0
    %298 = vmatprep.subr.mxu0 0.0
    %299 = vmatpush2.msra.mxu0 0.0
    %300 = vmatprep.subr.mxu0 0.0
    %301 = vmatpush2.msra.mxu0 0.0
    %302 = vmatprep.subr.mxu0 0.0
    %303 = vmatpush2.msra.mxu0 0.0
    %304 = vmatprep.subr.mxu0 0.0
    %305 = vmatpush2.msra.mxu0 0.0
    %306 = vmatprep.subr.mxu0 0.0
    %307 = vmatpush2.msra.mxu0 0.0
    %308 = vmatprep.subr.mxu0 0.0
    %309 = vmatpush2.msra.mxu0 0.0
    %310 = vmatprep.subr.mxu0 0.0
    %311 = vmatpush2.msra.mxu0 0.0
    %312 = vmatprep.subr.mxu0 0.0
    %313 = vmatpush2.msra.mxu0 0.0
    %314 = vmatprep.subr.mxu0 0.0
    %315 = vmatpush2.msra.mxu0 0.0
    %316 = vmatprep.subr.mxu0 0.0
    %317 = vmatpush2.msra.mxu0 0.0
    %318 = vmatprep.subr.mxu0 0.0
    %319 = vmatpush2.msra.mxu0 0.0
    %320 = vmatprep.subr.mxu0 0.0
    %321 = vmatpush2.msra.mxu0 0.0
    %322 = vmatprep.subr.mxu0 0.0
    %323 = vmatpush2.msra.mxu0 0.0
    %324 = vmatprep.subr.mxu0 0.0
    %325 = vmatpush2.msra.mxu0 0.0
    %326 = vmatprep.subr.mxu0 0.0
    %327 = vmatpush2.msra.mxu0 0.0
    %328 = vmatprep.mubr.f32.mxu0 0.0
    %329 = vmatmul.mubr.f32.gmra.mxu0 %v262
    %v330 = vpop.f32.mrf.mxu0
    %v331 = vadd.f32 0.0, %v330
    %v332 = vpop.f32.mrf.mxu0
    %333 = vdwg.mxu0
    %v334 = vsel %vm110, %v331, 0.0
    %v335 = vrot.slane %v334, 4
    %v336 = vadd.f32 %v334, %v335
    %v337 = vrot.slane %v336, 2
    %v338 = vadd.f32 %v336, %v337
    %v339 = vrot.slane %v338, 1
    %v340 = vadd.f32 %v338, %v339
    %v341 = vmul.f32 %v340, 0.125
    %v342 = vmul.f32 %v331, %v331
    %v343 = vsel %vm110, %v342, 0.0
    %v344 = vrot.slane %v343, 4
    %v345 = vadd.f32 %v343, %v344
    %v346 = vrot.slane %v345, 2
    %v347 = vadd.f32 %v345, %v346
    %v348 = vrot.slane %v347, 1
    %v349 = vadd.f32 %v347, %v348
    %v350 = vmul.f32 %v349, 0.125
    %v351 = vmul.f32 %v341, %v341
    %v352 = vsub.f32 %v350, %v351
    %v353 = vmax.f32 %v352, 0.0
    %v354 = vadd.f32 %v353, 1e-05
    %v355 = vrsqrt.pop %v354
    %v356 = vmul.f32 %v29, %v355
    %v357 = vmul.f32 %v341, %v356
    %v358 = vsub.f32 %v30, %v357
    %v359 = vlaneseq
    %v360 = vshrl.u32 %v359, 7
    %v361 = vsub.s32 0, %v360
    %v362 = vrot.slane %v356, %v361
    %v363 = vmul.f32 %v331, %v362
    %v364 = vlaneseq
    %v365 = vshrl.u32 %v364, 7
    %v366 = vsub.s32 0, %v365
    %v367 = vrot.slane %v358, %v366
    %v368 = vadd.f32 %v363, %v367
    %v369 = vmax.f32 %v368, 0.0
    %v370 = vlaneseq
    %v371 = vshrl.u32 %v370, 7
    %v372 = vsub.s32 0, %v371
    %v373 = vrot.slane %v31, %v372
    %v375 = vsel %vm110, %v369, 0
    %v378 = vsel %vm150, %v24, 0
    %380 = vmatprep.subr.mxu0 0.0
    %381 = vmatpush1.msra.mxu0 0.0
    %382 = vmatprep.subr.mxu0 0.0
    %383 = vmatpush1.msra.mxu0 0.0
    %384 = vmatprep.subr.mxu0 0.0
    %385 = vmatpush1.msra.mxu0 0.0
    %386 = vmatprep.subr.mxu0 0.0
    %387 = vmatpush1.msra.mxu0 0.0
    %388 = vmatprep.subr.mxu0 0.0
    %389 = vmatpush1.msra.mxu0 0.0
    %390 = vmatprep.subr.mxu0 0.0
    %391 = vmatpush1.msra.mxu0 0.0
    %392 = vmatprep.subr.mxu0 0.0
    %393 = vmatpush1.msra.mxu0 0.0
    %394 = vmatprep.subr.mxu0 0.0
    %395 = vmatpush1.msra.mxu0 0.0
    %396 = vmatprep.subr.mxu0 0.0
    %397 = vmatpush1.msra.mxu0 0.0
    %398 = vmatprep.subr.mxu0 0.0
    %399 = vmatpush1.msra.mxu0 0.0
    %400 = vmatprep.subr.mxu0 0.0
    %401 = vmatpush1.msra.mxu0 0.0
    %402 = vmatprep.subr.mxu0 0.0
    %403 = vmatpush1.msra.mxu0 0.0
    %404 = vmatprep.subr.mxu0 0.0
    %405 = vmatpush1.msra.mxu0 0.0
    %406 = vmatprep.subr.mxu0 0.0
    %407 = vmatpush1.msra.mxu0 0.0
    %408 = vmatprep.subr.mxu0 0.0
    %409 = vmatpush1.msra.mxu0 %v378
    %410 = vmatprep.subr.mxu0 0.0
    %411 = vmatpush1.msra.mxu0 %v23
    %412 = vmatprep.subr.mxu0 0.0
    %413 = vmatpush2.msra.mxu0 0.0
    %414 = vmatprep.subr.mxu0 0.0
    %415 = vmatpush2.msra.mxu0 0.0
    %416 = vmatprep.subr.mxu0 0.0
    %417 = vmatpush2.msra.mxu0 0.0
    %418 = vmatprep.subr.mxu0 0.0
    %419 = vmatpush2.msra.mxu0 0.0
    %420 = vmatprep.subr.mxu0 0.0
    %421 = vmatpush2.msra.mxu0 0.0
    %422 = vmatprep.subr.mxu0 0.0
    %423 = vmatpush2.msra.mxu0 0.0
    %424 = vmatprep.subr.mxu0 0.0
    %425 = vmatpush2.msra.mxu0 0.0
    %426 = vmatprep.subr.mxu0 0.0
    %427 = vmatpush2.msra.mxu0 0.0
    %428 = vmatprep.subr.mxu0 0.0
    %429 = vmatpush2.msra.mxu0 0.0
    %430 = vmatprep.subr.mxu0 0.0
    %431 = vmatpush2.msra.mxu0 0.0
    %432 = vmatprep.subr.mxu0 0.0
    %433 = vmatpush2.msra.mxu0 0.0
    %434 = vmatprep.subr.mxu0 0.0
    %435 = vmatpush2.msra.mxu0 0.0
    %436 = vmatprep.subr.mxu0 0.0
    %437 = vmatpush2.msra.mxu0 0.0
    %438 = vmatprep.subr.mxu0 0.0
    %439 = vmatpush2.msra.mxu0 0.0
    %440 = vmatprep.subr.mxu0 0.0
    %441 = vmatpush2.msra.mxu0 0.0
    %442 = vmatprep.subr.mxu0 0.0
    %443 = vmatpush2.msra.mxu0 0.0
    %444 = vmatprep.mubr.f32.mxu0 0.0
    %445 = vmatmul.mubr.f32.gmra.mxu0 %v375
    %v446 = vpop.f32.mrf.mxu0
    %v447 = vadd.f32 %v373, %v446
    %v448 = vpop.f32.mrf.mxu0
    %449 = vdwg.mxu0
    %450 = vst.msk [vmem:[#allocation2] sm:$0xff] %vm32, %v447
    // Predicated region
    $region14: #{tpu_custom_call.1} parent=1 // pred_check
      _
    $region15: #{tpu_custom_call.1} parent=1 // pred_check_branch
      %452 = sbr.rel (0) target = $region17
    $region16: #{tpu_custom_call.1} parent=1 // pred_region
      %s454 = ssub.s32 128, 128
      %455 = vsyncadd [#allocation3], %s454
      %s457 = sshll.u32 [#allocation2], 4
      %s458 = int_to_ptr.vmem [resolvable:$true] %s457
      %460 = dma.vmem_to_hbm [thread:$0]  %s458, 128, %s3, [#allocation3]
    $region17: #{tpu_custom_call.1} parent=1 // pred_fallthru
      _
    // Predicated region
    $region18: #{tpu_custom_call.1} parent=1 // pred_check
      _
    $region19: #{tpu_custom_call.1} parent=1 // pred_check_branch
      %462 = sbr.rel (0) target = $region21
    $region20: #{tpu_custom_call.1} parent=1 // pred_region
      %463 = dma.done [#allocation3], 128
    $region21: #{tpu_custom_call.1} parent=1 // pred_fallthru
      _
    %464 = vsyncpa [#allocation3], 1

</llo_original>
